<compile_context>
chip_gen: v7x
topology: tpu7x:2x2x1
jax: 0.10.0
libtpu: 0.0.40
codegen_flags: <defaults>
</compile_context>

<pallas_src>
import math

import jax
import jax.numpy as jnp
from jax.experimental import pallas as pl
from jax.experimental.pallas import tpu as pltpu


def _global_filter_kernel(x_ref, f2_ref, gr_ref, gi_ref, w_ref, o_ref):
    # x_ref : (Q, ct)  bf16  rows = flattened spatial index n1*b + n2, cols = channels
    # f2_ref: (2P, Q)  bf16  stacked [Re; Im] forward 2-D rDFT operator (ortho)
    # gr_ref: (Q, P)   bf16  inverse operator acting on Re(Y)
    # gi_ref: (Q, P)   bf16  inverse operator acting on Im(Y)
    # w_ref : (2P, ct) bf16  stacked [Wr; Wi] learned filter (this channel chunk)
    # o_ref : (Q, ct)  f32
    p = gr_ref.shape[1]

    # Forward rfft2: one fused real/imag matmul, f32 accumulation on the MXU.
    s = jnp.dot(f2_ref[...], x_ref[...], preferred_element_type=jnp.float32)  # (2P, ct)
    sr, si = s[:p], s[p:]                       # sublane-aligned slices (p % 16 == 0)

    w = w_ref[...]                              # bf16, promoted on the VPU
    wr, wi = w[:p], w[p:]

    # Elementwise complex multiply by the learned global filter (VPU).
    yr = (sr * wr - si * wi).astype(jnp.bfloat16)
    yi = (sr * wi + si * wr).astype(jnp.bfloat16)

    # Inverse rfft2 as two accumulating matmuls (no concat / extra VMEM copy).
    o_ref[...] = (
        jnp.dot(gr_ref[...], yr, preferred_element_type=jnp.float32)
        + jnp.dot(gi_ref[...], yi, preferred_element_type=jnp.float32)
    )


def _make_dft_operators(a, b):
    """Fused real 2-D rDFT / inverse-rDFT operators, norm='ortho', as bf16."""
    bfreq = b // 2 + 1
    n1 = jnp.arange(a, dtype=jnp.float32)
    n2 = jnp.arange(b, dtype=jnp.float32)
    k1 = jnp.arange(a, dtype=jnp.float32)
    k2 = jnp.arange(bfreq, dtype=jnp.float32)

    # theta[(k1,k2), (n1,n2)] = 2*pi*(n1*k1/a + n2*k2/b)
    t1 = jnp.outer(k1, n1) / a                              # (a, a)
    t2 = jnp.outer(k2, n2) / b                              # (bfreq, b)
    theta = 2.0 * math.pi * (t1[:, None, :, None] + t2[None, :, None, :])
    theta = theta.reshape(a * bfreq, a * b)                 # (P, Q)
    scale = 1.0 / math.sqrt(a * b)
    cos_t = jnp.cos(theta) * scale
    sin_t = jnp.sin(theta) * scale

    # Forward: S = F2 @ X with S[:P] = Re(rfft2), S[P:] = Im(rfft2)   (ortho).
    f2 = jnp.concatenate([cos_t, -sin_t], axis=0)           # (2P, Q)

    # Inverse c2r (irfft2, ortho): y = Gr @ Yr + Gi @ Yi.  Interior k2 columns
    # are counted twice (Hermitian mirror along k2); the DC and (even b)
    # Nyquist k2 columns once.  At those k2 the c2r step discards only the
    # imaginary part of the row-wise k1-ifft output, and since the k2 phase is
    # 0 / pi*n2 there (sin = 0), the full complex Y[k1, k2] still enters with
    # weight 1 — exactly torch.fft.irfft2 semantics for arbitrary complex input.
    k2i = jnp.arange(bfreq)
    if b % 2 == 0:
        dk = jnp.where((k2i == 0) | (k2i == b // 2), 1.0, 2.0)
    else:
        dk = jnp.where(k2i == 0, 1.0, 2.0)
    dup = jnp.tile(dk.astype(jnp.float32), (a,))[:, None]   # (P, 1)
    gr = (cos_t * dup).T                                     # (Q, P)
    gi = (-sin_t * dup).T                                    # (Q, P)

    to = jnp.bfloat16
    return f2.astype(to), gr.astype(to), gi.astype(to)


def _pick_c_tile(C):
    """Largest lane-dense channel tile.

    Big tiles amortize the ~0.35 us per-grid-step overhead and give long
    unmasked vst / DMA bursts.  At ct=2048 (bf16 inputs, f32 output) the
    double-buffered working set plus intermediates is ~14 MB, inside every
    generation's budget with the explicit vmem limit below.  No >=2-step
    constraint is imposed: v7x's two TensorCores are fed by the (C-chunk, B)
    grid, and on v5e/v6e the grid is a serial loop anyway.
    """
    for cand in (2048, 1536, 1024, 768, 640, 512, 384, 256, 128):
        if C % cand == 0:
            return cand
    return C  # C not a multiple of 128: single full-width (masked) block


def global_filter(x, complex_weight, spatial_size=(16, 12)):
    """JAX/Pallas equivalent of GlobalFilter.forward.

    x:              (B, N, C) with N = a*b
    complex_weight: (a, b//2+1, C, 2) float
    returns:        (B, N, C) float32
    """
    B, N, C = x.shape
    if spatial_size is None:
        a = b = int(math.sqrt(N))
    else:
        a, b = spatial_size
    assert a * b == N
    bfreq = b // 2 + 1
    assert complex_weight.shape == (a, bfreq, C, 2)

    Q = a * b          # spatial rows (sublane axis inside the kernel)
    P = a * bfreq      # spectral rows

    # Stream all operands in bf16 (HBM-bound kernel); f32 accumulation inside.
    xk = x.astype(jnp.bfloat16)                                   # (B, Q, C)
    f2, gr, gi = _make_dft_operators(a, b)                        # bf16 constants

    # Weight (k1, k2, C, 2) -> stacked [Wr; Wi] of shape (2P, C), bf16.
    wgt = jnp.concatenate(
        [complex_weight[..., 0].reshape(P, C),
         complex_weight[..., 1].reshape(P, C)], axis=0).astype(jnp.bfloat16)

    ct = _pick_c_tile(C)
    grid = (C // ct, B)    # channel chunks outer, batch inner (weight reuse)

    out = pl.pallas_call(
        _global_filter_kernel,
        out_shape=jax.ShapeDtypeStruct((B, N, C), jnp.float32),
        grid=grid,
        in_specs=[
            # x: one batch row, full spatial extent, one lane-dense channel chunk.
            pl.BlockSpec((None, Q, ct), lambda ci, bi: (bi, 0, ci)),
            # Constant DFT operators: block index never changes -> DMA'd once.
            pl.BlockSpec((2 * P, Q), lambda ci, bi: (0, 0)),
            pl.BlockSpec((Q, P), lambda ci, bi: (0, 0)),
            pl.BlockSpec((Q, P), lambda ci, bi: (0, 0)),
            # Weight: constant over the inner batch axis -> one DMA per C chunk.
            pl.BlockSpec((2 * P, ct), lambda ci, bi: (0, ci)),
        ],
        out_specs=pl.BlockSpec((None, Q, ct), lambda ci, bi: (bi, 0, ci)),
        compiler_params=pltpu.CompilerParams(
            dimension_semantics=("parallel", "parallel"),
            vmem_limit_bytes=32 * 1024 * 1024),
    )(xk, f2, gr, gi, wgt)

    return out


if __name__ == "__main__":
    key = jax.random.PRNGKey(0)
    k_w, k_x = jax.random.split(key)

    # Module config: dim=C, h=16, w=7; forward default spatial_size=(16, 12).
    # C=128 keeps the lane axis dense; B=2 gives the grid 2 parallel steps.
    B, C = 2, 128
    a, b = 16, 12
    h, w = 16, 7
    N = a * b

    # Deterministic synthetic parameter (matches torch.randn(h, w, dim, 2) * 0.02).
    complex_weight = jax.random.normal(k_w, (h, w, C, 2), dtype=jnp.float32) * 0.02
    x = jax.random.normal(k_x, (B, N, C), dtype=jnp.float32)

    out = jax.block_until_ready(global_filter(x, complex_weight, spatial_size=(a, b)))
    assert out.shape == (B, N, C) and out.dtype == jnp.float32

    # Sanity check against a plain-JAX FFT reference of the same semantics
    # (tolerance relaxed for bf16-streamed operands with f32 accumulation).
    xr = x.reshape(B, a, b, C).astype(jnp.float32)
    spec = jnp.fft.rfft2(xr, axes=(1, 2), norm="ortho")
    w_cplx = complex_weight[..., 0] + 1j * complex_weight[..., 1]
    ref = jnp.fft.irfft2(spec * w_cplx, s=(a, b), axes=(1, 2), norm="ortho")
    ref = ref.reshape(B, N, C)

    err = float(jnp.max(jnp.abs(out - ref)))
    if not err < 1e-2:
        raise AssertionError(f"mismatch vs FFT reference: max abs err = {err}")
    print("KERNEL_OK")
</pallas_src>

<mosaic_0001>
module attributes {stable_mosaic.version = 11 : i64} {
  func.func @_global_filter_kernel(%arg0: i32, %arg1: i32, %arg2: memref<1x192x128xbf16, #tpu.memory_space<vmem>>, %arg3: memref<224x192xbf16, #tpu.memory_space<vmem>>, %arg4: memref<192x112xbf16, #tpu.memory_space<vmem>>, %arg5: memref<192x112xbf16, #tpu.memory_space<vmem>>, %arg6: memref<224x128xbf16, #tpu.memory_space<vmem>>, %arg7: memref<1x192x128xf32, #tpu.memory_space<vmem>>) attributes {dimension_semantics = [#tpu.dimension_semantics<parallel>, #tpu.dimension_semantics<parallel>], iteration_bounds = array<i64: 1, 2>, scalar_prefetch = 0 : i64, scratch_operands = 0 : i64, tpu.core_type = #tpu.core_type<tc>, window_params = [{transform_indices = @transform_0, window_bounds = array<i64: 1, 192, 128>}, {pipeline_mode = #tpu.pipeline_mode<synchronous>, transform_indices = @transform_1, window_bounds = array<i64: 224, 192>}, {pipeline_mode = #tpu.pipeline_mode<synchronous>, transform_indices = @transform_2, window_bounds = array<i64: 192, 112>}, {pipeline_mode = #tpu.pipeline_mode<synchronous>, transform_indices = @transform_3, window_bounds = array<i64: 192, 112>}, {transform_indices = @transform_4, window_bounds = array<i64: 224, 128>}, {transform_indices = @transform_5, window_bounds = array<i64: 1, 192, 128>}]} {
    %c0 = arith.constant 0 : index
    %c0_0 = arith.constant 0 : index
    %0 = vector.load %arg3[%c0, %c0_0] : memref<224x192xbf16, #tpu.memory_space<vmem>>, vector<224x192xbf16>
    %c0_1 = arith.constant 0 : index
    %c0_2 = arith.constant 0 : index
    %c0_3 = arith.constant 0 : index
    %1 = vector.load %arg2[%c0_1, %c0_2, %c0_3] : memref<1x192x128xbf16, #tpu.memory_space<vmem>>, vector<1x192x128xbf16>
    %2 = vector.shape_cast %1 : vector<1x192x128xbf16> to vector<192x128xbf16>
    %cst = arith.constant dense<0.000000e+00> : vector<224x128xf32>
    %3 = tpu.matmul %0, %2, %cst {dimension_numbers = #tpu.dot_dimension_numbers<[1], [0], [0], [1], [0, 0, 1, 1], [], []>} : vector<224x192xbf16>, vector<192x128xbf16>, vector<224x128xf32> -> vector<224x128xf32>
    %4 = vector.extract_strided_slice %3 {offsets = [0, 0], sizes = [112, 128], strides = [1, 1]} : vector<224x128xf32> to vector<112x128xf32>
    %5 = vector.extract_strided_slice %3 {offsets = [112, 0], sizes = [112, 128], strides = [1, 1]} : vector<224x128xf32> to vector<112x128xf32>
    %c0_4 = arith.constant 0 : index
    %c0_5 = arith.constant 0 : index
    %6 = vector.load %arg6[%c0_4, %c0_5] : memref<224x128xbf16, #tpu.memory_space<vmem>>, vector<224x128xbf16>
    %7 = vector.extract_strided_slice %6 {offsets = [0, 0], sizes = [112, 128], strides = [1, 1]} : vector<224x128xbf16> to vector<112x128xbf16>
    %8 = vector.extract_strided_slice %6 {offsets = [112, 0], sizes = [112, 128], strides = [1, 1]} : vector<224x128xbf16> to vector<112x128xbf16>
    %9 = arith.extf %7 : vector<112x128xbf16> to vector<112x128xf32>
    %10 = arith.mulf %4, %9 : vector<112x128xf32>
    %11 = arith.extf %8 : vector<112x128xbf16> to vector<112x128xf32>
    %12 = arith.mulf %5, %11 : vector<112x128xf32>
    %13 = arith.subf %10, %12 : vector<112x128xf32>
    %14 = arith.truncf %13 : vector<112x128xf32> to vector<112x128xbf16>
    %15 = arith.extf %8 : vector<112x128xbf16> to vector<112x128xf32>
    %16 = arith.mulf %4, %15 : vector<112x128xf32>
    %17 = arith.extf %7 : vector<112x128xbf16> to vector<112x128xf32>
    %18 = arith.mulf %5, %17 : vector<112x128xf32>
    %19 = arith.addf %16, %18 : vector<112x128xf32>
    %20 = arith.truncf %19 : vector<112x128xf32> to vector<112x128xbf16>
    %c0_6 = arith.constant 0 : index
    %c0_7 = arith.constant 0 : index
    %21 = vector.load %arg4[%c0_6, %c0_7] : memref<192x112xbf16, #tpu.memory_space<vmem>>, vector<192x112xbf16>
    %cst_8 = arith.constant dense<0.000000e+00> : vector<192x128xf32>
    %22 = tpu.matmul %21, %14, %cst_8 {dimension_numbers = #tpu.dot_dimension_numbers<[1], [0], [0], [1], [0, 0, 1, 1], [], []>} : vector<192x112xbf16>, vector<112x128xbf16>, vector<192x128xf32> -> vector<192x128xf32>
    %c0_9 = arith.constant 0 : index
    %c0_10 = arith.constant 0 : index
    %23 = vector.load %arg5[%c0_9, %c0_10] : memref<192x112xbf16, #tpu.memory_space<vmem>>, vector<192x112xbf16>
    %cst_11 = arith.constant dense<0.000000e+00> : vector<192x128xf32>
    %24 = tpu.matmul %23, %20, %cst_11 {dimension_numbers = #tpu.dot_dimension_numbers<[1], [0], [0], [1], [0, 0, 1, 1], [], []>} : vector<192x112xbf16>, vector<112x128xbf16>, vector<192x128xf32> -> vector<192x128xf32>
    %25 = arith.addf %22, %24 : vector<192x128xf32>
    %c0_12 = arith.constant 0 : index
    %c0_13 = arith.constant 0 : index
    %c0_14 = arith.constant 0 : index
    %26 = vector.load %arg7[%c0_12, %c0_13, %c0_14] : memref<1x192x128xf32, #tpu.memory_space<vmem>>, vector<1x192x128xf32>
    %27 = vector.shape_cast %26 : vector<1x192x128xf32> to vector<192x128xf32>
    %28 = vector.shape_cast %25 : vector<192x128xf32> to vector<1x192x128xf32>
    tpu.vector_store %arg7[%c0_12, %c0_13, %c0_14], %28 {strides = array<i32>} : memref<1x192x128xf32, #tpu.memory_space<vmem>>, vector<1x192x128xf32>,
    return
  }
  func.func @transform_0(%arg0: i32, %arg1: i32) -> (i32, i32, i32) {
    %c0_i32 = arith.constant 0 : i32
    %c0_i32_0 = arith.constant 0 : i32
    return %arg1, %c0_i32, %arg0 : i32, i32, i32
  }
  func.func @transform_1(%arg0: i32, %arg1: i32) -> (i32, i32) {
    %c0_i32 = arith.constant 0 : i32
    %c0_i32_0 = arith.constant 0 : i32
    %c0_i32_1 = arith.constant 0 : i32
    return %c0_i32, %c0_i32_0 : i32, i32
  }
  func.func @transform_2(%arg0: i32, %arg1: i32) -> (i32, i32) {
    %c0_i32 = arith.constant 0 : i32
    %c0_i32_0 = arith.constant 0 : i32
    %c0_i32_1 = arith.constant 0 : i32
    return %c0_i32, %c0_i32_0 : i32, i32
  }
  func.func @transform_3(%arg0: i32, %arg1: i32) -> (i32, i32) {
    %c0_i32 = arith.constant 0 : i32
    %c0_i32_0 = arith.constant 0 : i32
    %c0_i32_1 = arith.constant 0 : i32
    return %c0_i32, %c0_i32_0 : i32, i32
  }
  func.func @transform_4(%arg0: i32, %arg1: i32) -> (i32, i32) {
    %c0_i32 = arith.constant 0 : i32
    %c0_i32_0 = arith.constant 0 : i32
    return %c0_i32, %arg0 : i32, i32
  }
  func.func @transform_5(%arg0: i32, %arg1: i32) -> (i32, i32, i32) {
    %c0_i32 = arith.constant 0 : i32
    %c0_i32_0 = arith.constant 0 : i32
    return %arg1, %c0_i32, %arg0 : i32, i32, i32
  }
}

</mosaic_0001>

<llo_original>
// kernel: tpu_custom_call.1
$region0: #{tpu_custom_call.1}
  #allocation0 [shape = 'u32[]', space=smem, size = 0x4, offset = 0x4, fixed_abs, tag = 'smem constant byte address 0x4 - core index']
  #allocation1 [shape = 'u32[144,128]{1,0:T(1,128)}', space=vmem, size = 0x12000, scoped, tag = 'internal scratch']
  %s0 = inlined_call_operand.vmem [shape: bf16[2,192,128], index: 0, kind: input, shape index: {}]
  %s1 = inlined_call_operand.vmem [shape: bf16[224,192], index: 1, kind: input, shape index: {}]
  %s2 = inlined_call_operand.vmem [shape: bf16[192,112], index: 2, kind: input, shape index: {}]
  %s3 = inlined_call_operand.hbm [shape: bf16[192,112], index: 3, kind: input, shape index: {}]
  %s4 = inlined_call_operand.vmem [shape: bf16[224,128], index: 4, kind: input, shape index: {}]
  %s5 = inlined_call_operand.hbm [shape: f32[2,192,128], index: 5, kind: output, shape index: {}]
  %s6 = sld [smem:[#allocation0]]
  $region57: #{tpu_custom_call.1} parent=0
    _
  %s8 = ssub.s32 1, %s6
  %s9 = scalar_select 0, %s8, %s6
  $region1: #{tpu_custom_call.1} parent=0
    #allocation2 [shape = 'u8[49152]{0}', space=vmem, size = 0xc000, scoped, tag = 'input window, operand 3, single buffered']
    #allocation3 [shape = 's32[2]{0}', space=sflag, size = 0x8, scoped, tag = 'scoped memory for tpu_custom_call.1']
    #allocation4 [shape = 's32[2]{0}', space=sflag, size = 0x8, scoped, tag = 'scoped memory for tpu_custom_call.1']
    #allocation5 [shape = 'u8[196608]{0}', space=vmem, size = 0x30000, scoped, tag = 'output window, operand 0']
    %10 = vsyncpa [#allocation3], 0
    %11 = vsyncpa [#allocation4], 0
    %s12 = scalar_lea.sflag [#allocation4], 1
    %13 = vsyncpa %s12, 0
    loop: start=0, step=1, limit=4
    $region2: #{tpu_custom_call.1} parent=1 // loop_pre_header
      _
    $region3: #{tpu_custom_call.1} parent=1 // loop_header
      %s15 = sphi 0, %s19
      %p16 = scmp.ge.s32.totalorder %s15, 4
      %s22 = sphi 0, %s34
      %s23 = sphi 0, %s30
      %s24 = sphi 0, %s22
      %s25 = sphi 0, %s23
      %s26 = sphi 0, %s24
      %s27 = sphi 0, %s25
      %s39 = sphi 0, %s41
      %s42 = sphi 0, %s39
      %s43 = sphi 0, %s42
      %s59 = sphi 0, %s43
      %s63 = sphi 0, %s63
      %s65 = sphi 0, %s63
      %s66 = sphi 0, %s65
      %s80 = sphi 0, %s66
      %s84 = sphi 0, %s84
      %s86 = sphi 0, %s84
      %s87 = sphi 0, %s86
      %s101 = sphi 0, %s87
      %s105 = sphi 0, %s105
      %s107 = sphi 0, %s105
      %s108 = sphi 0, %s107
      %s122 = sphi 0, %s108
      %s128 = sphi 0, %s130
      %s131 = sphi 0, %s128
      %s132 = sphi 0, %s131
      %s148 = sphi 0, %s132
      %s156 = sphi 0, %s158
      %s159 = sphi 0, %s156
      %s160 = sphi 0, %s159
      %s176 = sphi 0, %s160
    $region4: #{tpu_custom_call.1} parent=1 // loop_header_branch
      %18 = sbr.rel (%p16) target = $region8
    $region5: #{tpu_custom_call.1} parent=1 // loop_body
      %s20 = ssub.s32 %s15, 1
      %s21 = ssub.s32 %s15, 2
      %s28 = sadd.s32 1, %s23
      %p29 = scmp.ge.s32.totalorder %s28, 2
      %s30 = scalar_select %p29, 0, %s28
      %s31 = sadd.s32 1, %s22
      %s32 = scalar_select %p29, %s31, %s22
      %p33 = scmp.ge.s32.totalorder %s32, 1
      %s34 = scalar_select %p33, 0, %s32
      %s35 = ssub.s32 %s23, %s30
      %s36 = ssub.s32 %s22, %s34
      %s37 = sor.u32 %s35, %s36
      %p38 = scmp.eq.s32.totalorder %s37, 0
      %s40 = sadd.s32 %s39, 1
      %s41 = scalar_select %p38, %s39, %s40
      %p44 = pneg %p38
      %p45 = scmp.eq.s32.totalorder %s15, 1
      %p46 = por %p44, %p45
      %p47 = scmp.ne.s32.totalorder %s39, %s42
      %p48 = scmp.eq.s32.totalorder %s15, 0
      %p49 = por %p47, %p48
      %p50 = scmp.ne.s32.totalorder %s39, %s42
      %p51 = scmp.eq.s32.totalorder %s20, 1
      %p52 = por %p50, %p51
      %p53 = scmp.ne.s32.totalorder %s42, %s43
      %p54 = scmp.eq.s32.totalorder %s20, 0
      %p55 = por %p53, %p54
      %p56 = scmp.ne.s32.totalorder %s42, %s43
      %p57 = scmp.eq.s32.totalorder %s21, 1
      %p58 = por %p56, %p57
      %p60 = scmp.ne.s32.totalorder %s43, %s59
      %p61 = scmp.eq.s32.totalorder %s21, 0
      %p62 = por %p60, %p61
      %s64 = sadd.s32 %s63, 1
      %p67 = scmp.eq.s32.totalorder %s15, 1
      %p68 = scmp.ne.s32.totalorder %s63, %s65
      %p69 = scmp.eq.s32.totalorder %s15, 0
      %p70 = por %p68, %p69
      %p71 = scmp.ne.s32.totalorder %s63, %s65
      %p72 = scmp.eq.s32.totalorder %s20, 1
      %p73 = por %p71, %p72
      %p74 = scmp.ne.s32.totalorder %s65, %s66
      %p75 = scmp.eq.s32.totalorder %s20, 0
      %p76 = por %p74, %p75
      %p77 = scmp.ne.s32.totalorder %s65, %s66
      %p78 = scmp.eq.s32.totalorder %s21, 1
      %p79 = por %p77, %p78
      %p81 = scmp.ne.s32.totalorder %s66, %s80
      %p82 = scmp.eq.s32.totalorder %s21, 0
      %p83 = por %p81, %p82
      %s85 = sadd.s32 %s84, 1
      %p88 = scmp.eq.s32.totalorder %s15, 1
      %p89 = scmp.ne.s32.totalorder %s84, %s86
      %p90 = scmp.eq.s32.totalorder %s15, 0
      %p91 = por %p89, %p90
      %p92 = scmp.ne.s32.totalorder %s84, %s86
      %p93 = scmp.eq.s32.totalorder %s20, 1
      %p94 = por %p92, %p93
      %p95 = scmp.ne.s32.totalorder %s86, %s87
      %p96 = scmp.eq.s32.totalorder %s20, 0
      %p97 = por %p95, %p96
      %p98 = scmp.ne.s32.totalorder %s86, %s87
      %p99 = scmp.eq.s32.totalorder %s21, 1
      %p100 = por %p98, %p99
      %p102 = scmp.ne.s32.totalorder %s87, %s101
      %p103 = scmp.eq.s32.totalorder %s21, 0
      %p104 = por %p102, %p103
      %s106 = sadd.s32 %s105, 1
      %p109 = scmp.eq.s32.totalorder %s15, 1
      %p110 = scmp.ne.s32.totalorder %s105, %s107
      %p111 = scmp.eq.s32.totalorder %s15, 0
      %p112 = por %p110, %p111
      %p113 = scmp.ne.s32.totalorder %s105, %s107
      %p114 = scmp.eq.s32.totalorder %s20, 1
      %p115 = por %p113, %p114
      %p116 = scmp.ne.s32.totalorder %s107, %s108
      %p117 = scmp.eq.s32.totalorder %s20, 0
      %p118 = por %p116, %p117
      %p119 = scmp.ne.s32.totalorder %s107, %s108
      %p120 = scmp.eq.s32.totalorder %s21, 1
      %p121 = por %p119, %p120
      %p123 = scmp.ne.s32.totalorder %s108, %s122
      %p124 = scmp.eq.s32.totalorder %s21, 0
      %p125 = por %p123, %p124
      %s126 = ssub.s32 %s22, %s34
      %p127 = scmp.eq.s32.totalorder %s126, 0
      %s129 = sadd.s32 %s128, 1
      %s130 = scalar_select %p127, %s128, %s129
      %p133 = pneg %p127
      %p134 = scmp.eq.s32.totalorder %s15, 1
      %p135 = por %p133, %p134
      %p136 = scmp.ne.s32.totalorder %s128, %s131
      %p137 = scmp.eq.s32.totalorder %s15, 0
      %p138 = por %p136, %p137
      %p139 = scmp.ne.s32.totalorder %s128, %s131
      %p140 = scmp.eq.s32.totalorder %s20, 1
      %p141 = por %p139, %p140
      %p142 = scmp.ne.s32.totalorder %s131, %s132
      %p143 = scmp.eq.s32.totalorder %s20, 0
      %p144 = por %p142, %p143
      %p145 = scmp.ne.s32.totalorder %s131, %s132
      %p146 = scmp.eq.s32.totalorder %s21, 1
      %p147 = por %p145, %p146
      %p149 = scmp.ne.s32.totalorder %s132, %s148
      %p150 = scmp.eq.s32.totalorder %s21, 0
      %p151 = por %p149, %p150
      %s152 = ssub.s32 %s23, %s30
      %s153 = ssub.s32 %s22, %s34
      %s154 = sor.u32 %s152, %s153
      %p155 = scmp.eq.s32.totalorder %s154, 0
      %s157 = sadd.s32 %s156, 1
      %s158 = scalar_select %p155, %s156, %s157
      %p161 = pneg %p155
      %p162 = scmp.eq.s32.totalorder %s15, 1
      %p163 = por %p161, %p162
      %p164 = scmp.ne.s32.totalorder %s156, %s159
      %p165 = scmp.eq.s32.totalorder %s15, 0
      %p166 = por %p164, %p165
      %p167 = scmp.ne.s32.totalorder %s156, %s159
      %p168 = scmp.eq.s32.totalorder %s20, 1
      %p169 = por %p167, %p168
      %p170 = scmp.ne.s32.totalorder %s159, %s160
      %p171 = scmp.eq.s32.totalorder %s20, 0
      %p172 = por %p170, %p171
      %p173 = scmp.ne.s32.totalorder %s159, %s160
      %p174 = scmp.eq.s32.totalorder %s21, 1
      %p175 = por %p173, %p174
      %p177 = scmp.ne.s32.totalorder %s160, %s176
      %p178 = scmp.eq.s32.totalorder %s21, 0
      %p179 = por %p177, %p178
      %p180 = scmp.le.s32.totalorder 1, %s15
      %p181 = scmp.lt.s32.totalorder %s15, 3
      %p182 = pnand %p180, %p181
      %p183 = pneg %p182
      // Predicated region
      $region9: #{tpu_custom_call.1} parent=5 // pred_check
        _
      $region10: #{tpu_custom_call.1} parent=5 // pred_check_branch
        %185 = sbr.rel (%p182) target = $region12
      $region11: #{tpu_custom_call.1} parent=5 // pred_region
        %s186 = ssub.s32 %s15, 1
        // Predicated region
        $region13: #{tpu_custom_call.1} parent=11 // pred_check
          %p187 = pneg %p76
        $region14: #{tpu_custom_call.1} parent=11 // pred_check_branch
          %189 = sbr.rel (%p187) target = $region16
        $region15: #{tpu_custom_call.1} parent=11 // pred_region
          _
        $region16: #{tpu_custom_call.1} parent=11 // pred_fallthru
          _
        // Predicated region
        $region17: #{tpu_custom_call.1} parent=11 // pred_check
          %p190 = pneg %p97
        $region18: #{tpu_custom_call.1} parent=11 // pred_check_branch
          %192 = sbr.rel (%p190) target = $region20
        $region19: #{tpu_custom_call.1} parent=11 // pred_region
          _
        $region20: #{tpu_custom_call.1} parent=11 // pred_fallthru
          _
        // Predicated region
        $region21: #{tpu_custom_call.1} parent=11 // pred_check
          %p193 = pneg %p118
        $region22: #{tpu_custom_call.1} parent=11 // pred_check_branch
          %195 = sbr.rel (%p193) target = $region24
        $region23: #{tpu_custom_call.1} parent=11 // pred_region
          %s197 = ssub.s32 1536, 1536
          %198 = vsyncadd [#allocation3], %s197
          %s199 = sshll.u32 [#allocation2], 4
          %s200 = int_to_ptr.vmem [resolvable:$true] %s199
          %205 = dma.hbm_to_vmem [thread:$0]  %s3, 1536, %s200, [#allocation3], 64, 64, 4
        $region24: #{tpu_custom_call.1} parent=11 // pred_fallthru
          _
        // Predicated region
        $region25: #{tpu_custom_call.1} parent=11 // pred_check
          %p206 = pneg %p144
        $region26: #{tpu_custom_call.1} parent=11 // pred_check_branch
          %208 = sbr.rel (%p206) target = $region28
        $region27: #{tpu_custom_call.1} parent=11 // pred_region
          %p209 = scmp.lt.s32.totalorder %s24, 0
          %s210 = scalar_select %p209, %s24, 0
          %s211 = smul.addr %s210, 4
          %s212 = scalar_lea.vmem %s4, %s211
        $region28: #{tpu_custom_call.1} parent=11 // pred_fallthru
          _
      $region12: #{tpu_custom_call.1} parent=5 // pred_fallthru
        _
      %p213 = scmp.lt.s32.totalorder %s15, 2
      // Predicated region
      $region29: #{tpu_custom_call.1} parent=5 // pred_check
        %p214 = pneg %p213
      $region30: #{tpu_custom_call.1} parent=5 // pred_check_branch
        %216 = sbr.rel (%p214) target = $region32
      $region31: #{tpu_custom_call.1} parent=5 // pred_region
        // Predicated region
        $region33: #{tpu_custom_call.1} parent=31 // pred_check
          %p217 = pneg %p49
        $region34: #{tpu_custom_call.1} parent=31 // pred_check_branch
          %219 = sbr.rel (%p217) target = $region36
        $region35: #{tpu_custom_call.1} parent=31 // pred_region
          %p220 = scmp.lt.s32.totalorder %s23, 1
          %s221 = scalar_select %p220, %s23, 1
          %p222 = scmp.lt.s32.totalorder %s22, 0
          %s223 = scalar_select %p222, %s22, 0
          %s224 = smul.addr %s221, 24
          %s225 = sadd.s32 %s223, %s224
          %s226 = smul.addr %s225, 4
          %s227 = scalar_lea.vmem %s0, %s226
        $region36: #{tpu_custom_call.1} parent=31 // pred_fallthru
          _
      $region32: #{tpu_custom_call.1} parent=5 // pred_fallthru
        _
      %p228 = scmp.le.s32.totalorder 1, %s15
      %p229 = scmp.lt.s32.totalorder %s15, 3
      %p230 = pnand %p228, %p229
      %p231 = pneg %p230
      // Predicated region
      $region37: #{tpu_custom_call.1} parent=5 // pred_check
        _
      $region38: #{tpu_custom_call.1} parent=5 // pred_check_branch
        %233 = sbr.rel (%p230) target = $region40
      $region39: #{tpu_custom_call.1} parent=5 // pred_region
        %s234 = ssub.s32 %s15, 1
        // Predicated region
        $region41: #{tpu_custom_call.1} parent=39 // pred_check
          %p235 = pneg %p118
        $region42: #{tpu_custom_call.1} parent=39 // pred_check_branch
          %237 = sbr.rel (%p235) target = $region44
        $region43: #{tpu_custom_call.1} parent=39 // pred_region
          %238 = dma.done [#allocation3], 1536
        $region44: #{tpu_custom_call.1} parent=39 // pred_fallthru
          _
        %p239 = scmp.lt.s32.totalorder %s25, 1
        %s240 = scalar_select %p239, %s25, 1
        %p241 = scmp.lt.s32.totalorder %s24, 0
        %s242 = scalar_select %p241, %s24, 0
        %s243 = smul.addr %s240, 24
        %s244 = sadd.s32 %s242, %s243
        %s245 = smul.addr %s244, 4
        %s246 = scalar_lea.vmem %s0, %s245
        %p247 = pneg %p55
        %p248 = pneg %p52
        %p249 = pneg %p76
        %p250 = pneg %p73
        %p251 = pneg %p97
        %p252 = pneg %p94
        %p253 = pneg %p118
        %p254 = pneg %p115
        %p255 = scmp.lt.s32.totalorder %s24, 0
        %s256 = scalar_select %p255, %s24, 0
        %s257 = smul.addr %s256, 4
        %s258 = scalar_lea.vmem %s4, %s257
        %p259 = pneg %p144
        %p260 = pneg %p141
        %p261 = pneg %p172
        %p262 = pneg %p169
        %s263 = sand.u32 %s159, 1
        %s264 = scalar_lea.sflag [#allocation4], %s263
        %s265 = sand.u32 %s159, 1
        %s266 = smul.addr %s265, 192
        %s267 = scalar_lea.vmem [#allocation5], %s266
        %p268 = scmp.lt.s32.totalorder %s25, 1
        %s269 = scalar_select %p268, %s25, 1
        %p270 = scmp.lt.s32.totalorder %s24, 0
        %s271 = scalar_select %p270, %s24, 0
        %s272 = smul.addr %s269, 24
        %s273 = sadd.s32 %s271, %s272
        %s274 = smul.addr %s273, 4
        %s275 = scalar_lea.vmem %s0, %s274
        %p276 = scmp.lt.s32.totalorder %s24, 0
        %s277 = scalar_select %p276, %s24, 0
        %s278 = smul.addr %s277, 4
        %s279 = scalar_lea.vmem %s4, %s278
        %v281 = vld [vmem:[%s1] sm:$0xff]
        %v282 = vld [vmem:[%s1 + $0x8] sm:$0xff]
        %v283 = vld [vmem:[%s1 + $0x10] sm:$0xff]
        %v284 = vld [vmem:[%s1 + $0x18] sm:$0xff]
        %v285 = vld [vmem:[%s1 + $0x20] sm:$0xff]
        %v286 = vld [vmem:[%s1 + $0x28] sm:$0xff]
        %v287 = vld [vmem:[%s1 + $0x30] sm:$0xff]
        %v288 = vld [vmem:[%s1 + $0x38] sm:$0xff]
        %v289 = vld [vmem:[%s1 + $0x40] sm:$0xff]
        %v290 = vld [vmem:[%s1 + $0x48] sm:$0xff]
        %v291 = vld [vmem:[%s1 + $0x50] sm:$0xff]
        %v292 = vld [vmem:[%s1 + $0x58] sm:$0xff]
        %v293 = vld [vmem:[%s1 + $0x60] sm:$0xff]
        %v294 = vld [vmem:[%s1 + $0x68] sm:$0xff]
        %v295 = vld [vmem:[%s1 + $0x70] sm:$0xff]
        %v296 = vld [vmem:[%s1 + $0x78] sm:$0xff]
        %v297 = vld [vmem:[%s1 + $0x80] sm:$0xff]
        %v298 = vld [vmem:[%s1 + $0x88] sm:$0xff]
        %v299 = vld [vmem:[%s1 + $0x90] sm:$0xff]
        %v300 = vld [vmem:[%s1 + $0x98] sm:$0xff]
        %v301 = vld [vmem:[%s1 + $0xa0] sm:$0xff]
        %v302 = vld [vmem:[%s1 + $0xa8] sm:$0xff]
        %v303 = vld [vmem:[%s1 + $0xb0] sm:$0xff]
        %v304 = vld [vmem:[%s1 + $0xb8] sm:$0xff]
        %v305 = vld [vmem:[%s1 + $0xc0] sm:$0xff]
        %v306 = vld [vmem:[%s1 + $0xc8] sm:$0xff]
        %v307 = vld [vmem:[%s1 + $0xd0] sm:$0xff]
        %v308 = vld [vmem:[%s1 + $0xd8] sm:$0xff]
        %v309 = vld [vmem:[%s275] sm:$0xf]
        %v310 = vld [vmem:[%s275 + $0x4] sm:$0xf]
        %v311 = vld [vmem:[%s275 + $0x8] sm:$0xf]
        %v312 = vld [vmem:[%s275 + $0xc] sm:$0xf]
        %v313 = vld [vmem:[%s275 + $0x10] sm:$0xf]
        %v314 = vld [vmem:[%s275 + $0x14] sm:$0xf]
        %v315 = vld [vmem:[%s275 + $0x18] sm:$0xf]
        %v316 = vld [vmem:[%s275 + $0x1c] sm:$0xf]
        %v317 = vld [vmem:[%s275 + $0x20] sm:$0xf]
        %v318 = vld [vmem:[%s275 + $0x24] sm:$0xf]
        %v319 = vld [vmem:[%s275 + $0x28] sm:$0xf]
        %v320 = vld [vmem:[%s275 + $0x2c] sm:$0xf]
        %v321 = vld [vmem:[%s275 + $0x30] sm:$0xf]
        %v322 = vld [vmem:[%s275 + $0x34] sm:$0xf]
        %v323 = vld [vmem:[%s275 + $0x38] sm:$0xf]
        %v324 = vld [vmem:[%s275 + $0x3c] sm:$0xf]
        %v325 = vld [vmem:[%s275 + $0x40] sm:$0xf]
        %v326 = vld [vmem:[%s275 + $0x44] sm:$0xf]
        %v327 = vld [vmem:[%s275 + $0x48] sm:$0xf]
        %v328 = vld [vmem:[%s275 + $0x4c] sm:$0xf]
        %v329 = vld [vmem:[%s275 + $0x50] sm:$0xf]
        %v330 = vld [vmem:[%s275 + $0x54] sm:$0xf]
        %v331 = vld [vmem:[%s275 + $0x58] sm:$0xf]
        %v332 = vld [vmem:[%s275 + $0x5c] sm:$0xf]
        %v361 = vunpack.c.l.b16 %v281
        %v362 = vunpack.c.h.b16 %v281
        %v363 = vunpack.c.l.b16 %v282
        %v364 = vunpack.c.h.b16 %v282
        %v365 = vunpack.c.l.b16 %v283
        %v366 = vunpack.c.h.b16 %v283
        %v367 = vunpack.c.l.b16 %v284
        %v368 = vunpack.c.h.b16 %v284
        %v369 = vunpack.c.l.b16 %v285
        %v370 = vunpack.c.h.b16 %v285
        %v371 = vunpack.c.l.b16 %v286
        %v372 = vunpack.c.h.b16 %v286
        %v373 = vunpack.c.l.b16 %v287
        %v374 = vunpack.c.h.b16 %v287
        %v375 = vunpack.c.l.b16 %v288
        %v376 = vunpack.c.h.b16 %v288
        %v377 = vunpack.c.l.b16 %v289
        %v378 = vunpack.c.h.b16 %v289
        %v379 = vunpack.c.l.b16 %v290
        %v380 = vunpack.c.h.b16 %v290
        %v381 = vunpack.c.l.b16 %v291
        %v382 = vunpack.c.h.b16 %v291
        %v383 = vunpack.c.l.b16 %v292
        %v384 = vunpack.c.h.b16 %v292
        %v385 = vunpack.c.l.b16 %v293
        %v386 = vunpack.c.h.b16 %v293
        %v387 = vunpack.c.l.b16 %v294
        %v388 = vunpack.c.h.b16 %v294
        %v389 = vunpack.c.l.b16 %v295
        %v390 = vunpack.c.h.b16 %v295
        %v391 = vunpack.c.l.b16 %v296
        %v392 = vunpack.c.h.b16 %v296
        %v393 = vunpack.c.l.b16 %v297
        %v394 = vunpack.c.h.b16 %v297
        %v395 = vunpack.c.l.b16 %v298
        %v396 = vunpack.c.h.b16 %v298
        %v397 = vunpack.c.l.b16 %v299
        %v398 = vunpack.c.h.b16 %v299
        %v399 = vunpack.c.l.b16 %v300
        %v400 = vunpack.c.h.b16 %v300
        %v401 = vunpack.c.l.b16 %v301
        %v402 = vunpack.c.h.b16 %v301
        %v403 = vunpack.c.l.b16 %v302
        %v404 = vunpack.c.h.b16 %v302
        %v405 = vunpack.c.l.b16 %v303
        %v406 = vunpack.c.h.b16 %v303
        %v407 = vunpack.c.l.b16 %v304
        %v408 = vunpack.c.h.b16 %v304
        %v409 = vunpack.c.l.b16 %v305
        %v410 = vunpack.c.h.b16 %v305
        %v411 = vunpack.c.l.b16 %v306
        %v412 = vunpack.c.h.b16 %v306
        %v413 = vunpack.c.l.b16 %v307
        %v414 = vunpack.c.h.b16 %v307
        %v415 = vunpack.c.l.b16 %v308
        %v416 = vunpack.c.h.b16 %v308
        %v417 = vpack.c.b16 %v363, %v361
        %v418 = vpack.c.b16 %v364, %v362
        %v419 = vpack.c.b16 %v367, %v365
        %v420 = vpack.c.b16 %v368, %v366
        %v421 = vpack.c.b16 %v371, %v369
        %v422 = vpack.c.b16 %v372, %v370
        %v423 = vpack.c.b16 %v375, %v373
        %v424 = vpack.c.b16 %v376, %v374
        %v425 = vpack.c.b16 %v379, %v377
        %v426 = vpack.c.b16 %v380, %v378
        %v427 = vpack.c.b16 %v383, %v381
        %v428 = vpack.c.b16 %v384, %v382
        %v429 = vpack.c.b16 %v387, %v385
        %v430 = vpack.c.b16 %v388, %v386
        %v431 = vpack.c.b16 %v391, %v389
        %v432 = vpack.c.b16 %v392, %v390
        %v433 = vpack.c.b16 %v395, %v393
        %v434 = vpack.c.b16 %v396, %v394
        %v435 = vpack.c.b16 %v399, %v397
        %v436 = vpack.c.b16 %v400, %v398
        %v437 = vpack.c.b16 %v403, %v401
        %v438 = vpack.c.b16 %v404, %v402
        %v439 = vpack.c.b16 %v407, %v405
        %v440 = vpack.c.b16 %v408, %v406
        %v441 = vpack.c.b16 %v411, %v409
        %v442 = vpack.c.b16 %v412, %v410
        %v443 = vpack.c.b16 %v415, %v413
        %v444 = vpack.c.b16 %v416, %v414
        %v483 = vunpack.c.l.b16 %v309
        %v484 = vunpack.c.l.b16 %v310
        %v485 = vunpack.c.l.b16 %v311
        %v486 = vunpack.c.l.b16 %v312
        %v487 = vunpack.c.l.b16 %v313
        %v488 = vunpack.c.l.b16 %v314
        %v489 = vunpack.c.l.b16 %v315
        %v490 = vunpack.c.l.b16 %v316
        %v491 = vunpack.c.l.b16 %v317
        %v492 = vunpack.c.l.b16 %v318
        %v493 = vunpack.c.l.b16 %v319
        %v494 = vunpack.c.l.b16 %v320
        %v495 = vunpack.c.l.b16 %v321
        %v496 = vunpack.c.l.b16 %v322
        %v497 = vunpack.c.l.b16 %v323
        %v498 = vunpack.c.l.b16 %v324
        %v499 = vunpack.c.l.b16 %v325
        %v500 = vunpack.c.l.b16 %v326
        %v501 = vunpack.c.l.b16 %v327
        %v502 = vunpack.c.l.b16 %v328
        %v503 = vunpack.c.l.b16 %v329
        %v504 = vunpack.c.l.b16 %v330
        %v505 = vunpack.c.l.b16 %v331
        %v506 = vunpack.c.l.b16 %v332
        %v507 = vpack.c.b16 %v484, %v483
        %v508 = vpack.c.b16 %v486, %v485
        %v509 = vpack.c.b16 %v488, %v487
        %v510 = vpack.c.b16 %v490, %v489
        %v511 = vpack.c.b16 %v492, %v491
        %v512 = vpack.c.b16 %v494, %v493
        %v513 = vpack.c.b16 %v496, %v495
        %v514 = vpack.c.b16 %v498, %v497
        %v515 = vpack.c.b16 %v500, %v499
        %v516 = vpack.c.b16 %v502, %v501
        %v517 = vpack.c.b16 %v504, %v503
        %v518 = vpack.c.b16 %v506, %v505
        %vm531 = vcmask 523264
        %v533 = vsel %vm531, %v418, 0
        %v536 = vsel %vm531, %v420, 0
        %v539 = vsel %vm531, %v422, 0
        %v542 = vsel %vm531, %v424, 0
        %v545 = vsel %vm531, %v426, 0
        %v548 = vsel %vm531, %v428, 0
        %v551 = vsel %vm531, %v430, 0
        %v554 = vsel %vm531, %v432, 0
        %v557 = vsel %vm531, %v434, 0
        %v560 = vsel %vm531, %v436, 0
        %v563 = vsel %vm531, %v438, 0
        %v566 = vsel %vm531, %v440, 0
        %v569 = vsel %vm531, %v442, 0
        %v572 = vsel %vm531, %v444, 0
        %574 = vmatprep.subr.bf16.mxu0 0
        %575 = vmatpush1.bf16.msra.mxu0 %v507
        %576 = vmatprep.subr.bf16.mxu0 0
        %577 = vmatpush1.bf16.msra.mxu0 %v508
        %578 = vmatprep.subr.bf16.mxu0 0
        %579 = vmatpush1.bf16.msra.mxu0 %v509
        %580 = vmatprep.subr.bf16.mxu0 0
        %581 = vmatpush1.bf16.msra.mxu0 %v510
        %582 = vmatprep.subr.bf16.mxu0 0
        %583 = vmatpush1.bf16.msra.mxu0 %v511
        %584 = vmatprep.subr.bf16.mxu0 0
        %585 = vmatpush1.bf16.msra.mxu0 %v512
        %586 = vmatprep.subr.bf16.mxu0 0
        %587 = vmatpush1.bf16.msra.mxu0 %v513
        %588 = vmatprep.subr.bf16.mxu0 0
        %589 = vmatpush1.bf16.msra.mxu0 %v514
        %590 = vmatprep.subr.bf16.mxu0 0
        %591 = vmatpush1.bf16.msra.mxu0 %v515
        %592 = vmatprep.subr.bf16.mxu0 0
        %593 = vmatpush1.bf16.msra.mxu0 %v516
        %594 = vmatprep.subr.bf16.mxu0 0
        %595 = vmatpush1.bf16.msra.mxu0 %v517
        %596 = vmatprep.subr.bf16.mxu0 0
        %597 = vmatpush1.bf16.msra.mxu0 %v518
        %598 = vmatprep.subr.bf16.mxu0 0
        %599 = vmatpush1.bf16.msra.mxu0 0
        %600 = vmatprep.subr.bf16.mxu0 0
        %601 = vmatpush1.bf16.msra.mxu0 0
        %602 = vmatprep.subr.bf16.mxu0 0
        %603 = vmatpush1.bf16.msra.mxu0 0
        %604 = vmatprep.subr.bf16.mxu0 0
        %605 = vmatpush1.bf16.msra.mxu0 0
        %606 = vmatprep.mubr.bf16.mxu0 %v533
        %607 = vmatmul.mubr.bf16.gmra.mrb[0].mxu0 %v417
        %v608 = vpop.f32.mrb[0].mxu0
        %v609 = vadd.f32 0.0, %v608
        %v610 = vpop.f32.mrb[0].mxu0
        %v611 = vpop.f32.mrb[0].mxu0
        %v612 = vadd.f32 0.0, %v611
        %v613 = vpop.f32.mrb[0].mxu0
        %614 = vmatprep.mubr.bf16.mxu0 %v536
        %615 = vmatmul.mubr.bf16.gmra.mrb[0].mxu0 %v419
        %v616 = vpop.f32.mrb[0].mxu0
        %v617 = vadd.f32 0.0, %v616
        %v618 = vpop.f32.mrb[0].mxu0
        %v619 = vpop.f32.mrb[0].mxu0
        %v620 = vadd.f32 0.0, %v619
        %v621 = vpop.f32.mrb[0].mxu0
        %622 = vmatprep.mubr.bf16.mxu0 %v539
        %623 = vmatmul.mubr.bf16.gmra.mrb[0].mxu0 %v421
        %v624 = vpop.f32.mrb[0].mxu0
        %v625 = vadd.f32 0.0, %v624
        %v626 = vpop.f32.mrb[0].mxu0
        %v627 = vpop.f32.mrb[0].mxu0
        %v628 = vadd.f32 0.0, %v627
        %v629 = vpop.f32.mrb[0].mxu0
        %630 = vmatprep.mubr.bf16.mxu0 %v542
        %631 = vmatmul.mubr.bf16.gmra.mrb[0].mxu0 %v423
        %v632 = vpop.f32.mrb[0].mxu0
        %v633 = vadd.f32 0.0, %v632
        %v634 = vpop.f32.mrb[0].mxu0
        %v635 = vpop.f32.mrb[0].mxu0
        %v636 = vadd.f32 0.0, %v635
        %v637 = vpop.f32.mrb[0].mxu0
        %638 = vmatprep.mubr.bf16.mxu0 %v545
        %639 = vmatmul.mubr.bf16.gmra.mrb[0].mxu0 %v425
        %v640 = vpop.f32.mrb[0].mxu0
        %v641 = vadd.f32 0.0, %v640
        %v642 = vpop.f32.mrb[0].mxu0
        %v643 = vpop.f32.mrb[0].mxu0
        %v644 = vadd.f32 0.0, %v643
        %v645 = vpop.f32.mrb[0].mxu0
        %646 = vmatprep.mubr.bf16.mxu0 %v548
        %647 = vmatmul.mubr.bf16.gmra.mrb[0].mxu0 %v427
        %v648 = vpop.f32.mrb[0].mxu0
        %v649 = vadd.f32 0.0, %v648
        %v650 = vpop.f32.mrb[0].mxu0
        %v651 = vpop.f32.mrb[0].mxu0
        %v652 = vadd.f32 0.0, %v651
        %v653 = vpop.f32.mrb[0].mxu0
        %654 = vmatprep.mubr.bf16.mxu0 %v551
        %655 = vmatmul.mubr.bf16.gmra.mrb[0].mxu0 %v429
        %v656 = vpop.f32.mrb[0].mxu0
        %v657 = vadd.f32 0.0, %v656
        %v658 = vpop.f32.mrb[0].mxu0
        %v659 = vpop.f32.mrb[0].mxu0
        %v660 = vadd.f32 0.0, %v659
        %v661 = vpop.f32.mrb[0].mxu0
        %662 = vmatprep.mubr.bf16.mxu0 %v554
        %663 = vmatmul.mubr.bf16.gmra.mrb[0].mxu0 %v431
        %v664 = vpop.f32.mrb[0].mxu0
        %v665 = vadd.f32 0.0, %v664
        %v666 = vpop.f32.mrb[0].mxu0
        %v667 = vpop.f32.mrb[0].mxu0
        %v668 = vadd.f32 0.0, %v667
        %v669 = vpop.f32.mrb[0].mxu0
        %670 = vmatprep.mubr.bf16.mxu0 %v557
        %671 = vmatmul.mubr.bf16.gmra.mrb[0].mxu0 %v433
        %v672 = vpop.f32.mrb[0].mxu0
        %v673 = vadd.f32 0.0, %v672
        %v674 = vpop.f32.mrb[0].mxu0
        %v675 = vpop.f32.mrb[0].mxu0
        %v676 = vadd.f32 0.0, %v675
        %v677 = vpop.f32.mrb[0].mxu0
        %678 = vmatprep.mubr.bf16.mxu0 %v560
        %679 = vmatmul.mubr.bf16.gmra.mrb[0].mxu0 %v435
        %v680 = vpop.f32.mrb[0].mxu0
        %v681 = vadd.f32 0.0, %v680
        %v682 = vpop.f32.mrb[0].mxu0
        %v683 = vpop.f32.mrb[0].mxu0
        %v684 = vadd.f32 0.0, %v683
        %v685 = vpop.f32.mrb[0].mxu0
        %686 = vmatprep.mubr.bf16.mxu0 %v563
        %687 = vmatmul.mubr.bf16.gmra.mrb[0].mxu0 %v437
        %v688 = vpop.f32.mrb[0].mxu0
        %v689 = vadd.f32 0.0, %v688
        %v690 = vpop.f32.mrb[0].mxu0
        %v691 = vpop.f32.mrb[0].mxu0
        %v692 = vadd.f32 0.0, %v691
        %v693 = vpop.f32.mrb[0].mxu0
        %694 = vmatprep.mubr.bf16.mxu0 %v566
        %695 = vmatmul.mubr.bf16.gmra.mrb[0].mxu0 %v439
        %v696 = vpop.f32.mrb[0].mxu0
        %v697 = vadd.f32 0.0, %v696
        %v698 = vpop.f32.mrb[0].mxu0
        %v699 = vpop.f32.mrb[0].mxu0
        %v700 = vadd.f32 0.0, %v699
        %v701 = vpop.f32.mrb[0].mxu0
        %702 = vmatprep.mubr.bf16.mxu0 %v569
        %703 = vmatmul.mubr.bf16.gmra.mrb[0].mxu0 %v441
        %v704 = vpop.f32.mrb[0].mxu0
        %v705 = vadd.f32 0.0, %v704
        %v706 = vpop.f32.mrb[0].mxu0
        %v707 = vpop.f32.mrb[0].mxu0
        %v708 = vadd.f32 0.0, %v707
        %v709 = vpop.f32.mrb[0].mxu0
        %710 = vmatprep.mubr.bf16.mxu0 %v572
        %711 = vmatmul.mubr.bf16.gmra.mrb[0].mxu0 %v443
        %v712 = vpop.f32.mrb[0].mxu0
        %v713 = vadd.f32 0.0, %v712
        %v714 = vpop.f32.mrb[0].mxu0
        %v715 = vpop.f32.mrb[0].mxu0
        %v716 = vadd.f32 0.0, %v715
        %v717 = vpop.f32.mrb[0].mxu0
        %718 = vdwg.mxu0
        %v719 = vld [vmem:[%s279] sm:$0xf]
        %v720 = vld [vmem:[%s279 + $0x4] sm:$0xf]
        %v721 = vld [vmem:[%s279 + $0x8] sm:$0xf]
        %v722 = vld [vmem:[%s279 + $0xc] sm:$0xf]
        %v723 = vld [vmem:[%s279 + $0x10] sm:$0xf]
        %v724 = vld [vmem:[%s279 + $0x14] sm:$0xf]
        %v725 = vld [vmem:[%s279 + $0x18] sm:$0xf]
        %v726 = vld [vmem:[%s279 + $0x1c] sm:$0xf]
        %v727 = vld [vmem:[%s279 + $0x20] sm:$0xf]
        %v728 = vld [vmem:[%s279 + $0x24] sm:$0xf]
        %v729 = vld [vmem:[%s279 + $0x28] sm:$0xf]
        %v730 = vld [vmem:[%s279 + $0x2c] sm:$0xf]
        %v731 = vld [vmem:[%s279 + $0x30] sm:$0xf]
        %v732 = vld [vmem:[%s279 + $0x34] sm:$0xf]
        %v733 = vld [vmem:[%s279 + $0x38] sm:$0xf]
        %v734 = vld [vmem:[%s279 + $0x3c] sm:$0xf]
        %v735 = vld [vmem:[%s279 + $0x40] sm:$0xf]
        %v736 = vld [vmem:[%s279 + $0x44] sm:$0xf]
        %v737 = vld [vmem:[%s279 + $0x48] sm:$0xf]
        %v738 = vld [vmem:[%s279 + $0x4c] sm:$0xf]
        %v739 = vld [vmem:[%s279 + $0x50] sm:$0xf]
        %v740 = vld [vmem:[%s279 + $0x54] sm:$0xf]
        %v741 = vld [vmem:[%s279 + $0x58] sm:$0xf]
        %v742 = vld [vmem:[%s279 + $0x5c] sm:$0xf]
        %v743 = vld [vmem:[%s279 + $0x60] sm:$0xf]
        %v744 = vld [vmem:[%s279 + $0x64] sm:$0xf]
        %v745 = vld [vmem:[%s279 + $0x68] sm:$0xf]
        %v746 = vld [vmem:[%s279 + $0x6c] sm:$0xf]
        %v747 = vunpack.c.l.bf16 %v719
        %v748 = vunpack.c.l.bf16 %v720
        %v749 = vunpack.c.l.bf16 %v721
        %v750 = vunpack.c.l.bf16 %v722
        %v751 = vunpack.c.l.bf16 %v723
        %v752 = vunpack.c.l.bf16 %v724
        %v753 = vunpack.c.l.bf16 %v725
        %v754 = vunpack.c.l.bf16 %v726
        %v755 = vunpack.c.l.bf16 %v727
        %v756 = vunpack.c.l.bf16 %v728
        %v757 = vunpack.c.l.bf16 %v729
        %v758 = vunpack.c.l.bf16 %v730
        %v759 = vunpack.c.l.bf16 %v731
        %v760 = vunpack.c.l.bf16 %v732
        %v761 = vmul.f32 %v609, %v747
        %v762 = vmul.f32 %v612, %v748
        %v763 = vmul.f32 %v617, %v749
        %v764 = vmul.f32 %v620, %v750
        %v765 = vmul.f32 %v625, %v751
        %v766 = vmul.f32 %v628, %v752
        %v767 = vmul.f32 %v633, %v753
        %v768 = vmul.f32 %v636, %v754
        %v769 = vmul.f32 %v641, %v755
        %v770 = vmul.f32 %v644, %v756
        %v771 = vmul.f32 %v649, %v757
        %v772 = vmul.f32 %v652, %v758
        %v773 = vmul.f32 %v657, %v759
        %v774 = vmul.f32 %v660, %v760
        %v775 = vunpack.c.l.bf16 %v733
        %v776 = vunpack.c.l.bf16 %v734
        %v777 = vunpack.c.l.bf16 %v735
        %v778 = vunpack.c.l.bf16 %v736
        %v779 = vunpack.c.l.bf16 %v737
        %v780 = vunpack.c.l.bf16 %v738
        %v781 = vunpack.c.l.bf16 %v739
        %v782 = vunpack.c.l.bf16 %v740
        %v783 = vunpack.c.l.bf16 %v741
        %v784 = vunpack.c.l.bf16 %v742
        %v785 = vunpack.c.l.bf16 %v743
        %v786 = vunpack.c.l.bf16 %v744
        %v787 = vunpack.c.l.bf16 %v745
        %v788 = vunpack.c.l.bf16 %v746
        %v789 = vmul.f32 %v665, %v775
        %v790 = vmul.f32 %v668, %v776
        %v791 = vmul.f32 %v673, %v777
        %v792 = vmul.f32 %v676, %v778
        %v793 = vmul.f32 %v681, %v779
        %v794 = vmul.f32 %v684, %v780
        %v795 = vmul.f32 %v689, %v781
        %v796 = vmul.f32 %v692, %v782
        %v797 = vmul.f32 %v697, %v783
        %v798 = vmul.f32 %v700, %v784
        %v799 = vmul.f32 %v705, %v785
        %v800 = vmul.f32 %v708, %v786
        %v801 = vmul.f32 %v713, %v787
        %v802 = vmul.f32 %v716, %v788
        %v803 = vsub.f32 %v761, %v789
        %v804 = vsub.f32 %v762, %v790
        %v805 = vsub.f32 %v763, %v791
        %v806 = vsub.f32 %v764, %v792
        %v807 = vsub.f32 %v765, %v793
        %v808 = vsub.f32 %v766, %v794
        %v809 = vsub.f32 %v767, %v795
        %v810 = vsub.f32 %v768, %v796
        %v811 = vsub.f32 %v769, %v797
        %v812 = vsub.f32 %v770, %v798
        %v813 = vsub.f32 %v771, %v799
        %v814 = vsub.f32 %v772, %v800
        %v815 = vsub.f32 %v773, %v801
        %v816 = vsub.f32 %v774, %v802
        %v817 = vpack.c.bf16 %v804, %v803
        %v818 = vpack.c.bf16 %v806, %v805
        %v819 = vpack.c.bf16 %v808, %v807
        %v820 = vpack.c.bf16 %v810, %v809
        %v821 = vpack.c.bf16 %v812, %v811
        %v822 = vpack.c.bf16 %v814, %v813
        %v823 = vpack.c.bf16 %v816, %v815
        %v824 = vmul.f32 %v609, %v775
        %v825 = vmul.f32 %v612, %v776
        %v826 = vmul.f32 %v617, %v777
        %v827 = vmul.f32 %v620, %v778
        %v828 = vmul.f32 %v625, %v779
        %v829 = vmul.f32 %v628, %v780
        %v830 = vmul.f32 %v633, %v781
        %v831 = vmul.f32 %v636, %v782
        %v832 = vmul.f32 %v641, %v783
        %v833 = vmul.f32 %v644, %v784
        %v834 = vmul.f32 %v649, %v785
        %v835 = vmul.f32 %v652, %v786
        %v836 = vmul.f32 %v657, %v787
        %v837 = vmul.f32 %v660, %v788
        %v838 = vmul.f32 %v665, %v747
        %v839 = vmul.f32 %v668, %v748
        %v840 = vmul.f32 %v673, %v749
        %v841 = vmul.f32 %v676, %v750
        %v842 = vmul.f32 %v681, %v751
        %v843 = vmul.f32 %v684, %v752
        %v844 = vmul.f32 %v689, %v753
        %v845 = vmul.f32 %v692, %v754
        %v846 = vmul.f32 %v697, %v755
        %v847 = vmul.f32 %v700, %v756
        %v848 = vmul.f32 %v705, %v757
        %v849 = vmul.f32 %v708, %v758
        %v850 = vmul.f32 %v713, %v759
        %v851 = vmul.f32 %v716, %v760
        %v852 = vadd.f32 %v824, %v838
        %v853 = vadd.f32 %v825, %v839
        %v854 = vadd.f32 %v826, %v840
        %v855 = vadd.f32 %v827, %v841
        %v856 = vadd.f32 %v828, %v842
        %v857 = vadd.f32 %v829, %v843
        %v858 = vadd.f32 %v830, %v844
        %v859 = vadd.f32 %v831, %v845
        %v860 = vadd.f32 %v832, %v846
        %v861 = vadd.f32 %v833, %v847
        %v862 = vadd.f32 %v834, %v848
        %v863 = vadd.f32 %v835, %v849
        %v864 = vadd.f32 %v836, %v850
        %v865 = vadd.f32 %v837, %v851
        %v866 = vpack.c.bf16 %v853, %v852
        %v867 = vpack.c.bf16 %v855, %v854
        %v868 = vpack.c.bf16 %v857, %v856
        %v869 = vpack.c.bf16 %v859, %v858
        %v870 = vpack.c.bf16 %v861, %v860
        %v871 = vpack.c.bf16 %v863, %v862
        %v872 = vpack.c.bf16 %v865, %v864
        %v873 = vld [vmem:[%s2] sm:$0xf]
        %v874 = vld [vmem:[%s2 + $0x4] sm:$0xf]
        %v875 = vld [vmem:[%s2 + $0x8] sm:$0xf]
        %v876 = vld [vmem:[%s2 + $0xc] sm:$0xf]
        %v877 = vld [vmem:[%s2 + $0x10] sm:$0xf]
        %v878 = vld [vmem:[%s2 + $0x14] sm:$0xf]
        %v879 = vld [vmem:[%s2 + $0x18] sm:$0xf]
        %v880 = vld [vmem:[%s2 + $0x1c] sm:$0xf]
        %v881 = vld [vmem:[%s2 + $0x20] sm:$0xf]
        %v882 = vld [vmem:[%s2 + $0x24] sm:$0xf]
        %v883 = vld [vmem:[%s2 + $0x28] sm:$0xf]
        %v884 = vld [vmem:[%s2 + $0x2c] sm:$0xf]
        %v885 = vld [vmem:[%s2 + $0x30] sm:$0xf]
        %v886 = vld [vmem:[%s2 + $0x34] sm:$0xf]
        %v887 = vld [vmem:[%s2 + $0x38] sm:$0xf]
        %v888 = vld [vmem:[%s2 + $0x3c] sm:$0xf]
        %v889 = vld [vmem:[%s2 + $0x40] sm:$0xf]
        %v890 = vld [vmem:[%s2 + $0x44] sm:$0xf]
        %v891 = vld [vmem:[%s2 + $0x48] sm:$0xf]
        %v892 = vld [vmem:[%s2 + $0x4c] sm:$0xf]
        %v893 = vld [vmem:[%s2 + $0x50] sm:$0xf]
        %v894 = vld [vmem:[%s2 + $0x54] sm:$0xf]
        %v895 = vld [vmem:[%s2 + $0x58] sm:$0xf]
        %v896 = vld [vmem:[%s2 + $0x5c] sm:$0xf]
        %v897 = vld [vmem:[#allocation2] sm:$0xf]
        %v898 = vld [vmem:[#allocation2 + $0x4] sm:$0xf]
        %v899 = vld [vmem:[#allocation2 + $0x8] sm:$0xf]
        %v900 = vld [vmem:[#allocation2 + $0xc] sm:$0xf]
        %v901 = vld [vmem:[#allocation2 + $0x10] sm:$0xf]
        %v902 = vld [vmem:[#allocation2 + $0x14] sm:$0xf]
        %v903 = vld [vmem:[#allocation2 + $0x18] sm:$0xf]
        %v904 = vld [vmem:[#allocation2 + $0x1c] sm:$0xf]
        %v905 = vld [vmem:[#allocation2 + $0x20] sm:$0xf]
        %v906 = vld [vmem:[#allocation2 + $0x24] sm:$0xf]
        %v907 = vld [vmem:[#allocation2 + $0x28] sm:$0xf]
        %v908 = vld [vmem:[#allocation2 + $0x2c] sm:$0xf]
        %v909 = vld [vmem:[#allocation2 + $0x30] sm:$0xf]
        %v910 = vld [vmem:[#allocation2 + $0x34] sm:$0xf]
        %v911 = vld [vmem:[#allocation2 + $0x38] sm:$0xf]
        %v912 = vld [vmem:[#allocation2 + $0x3c] sm:$0xf]
        %v913 = vld [vmem:[#allocation2 + $0x40] sm:$0xf]
        %v914 = vld [vmem:[#allocation2 + $0x44] sm:$0xf]
        %v915 = vld [vmem:[#allocation2 + $0x48] sm:$0xf]
        %v916 = vld [vmem:[#allocation2 + $0x4c] sm:$0xf]
        %v917 = vld [vmem:[#allocation2 + $0x50] sm:$0xf]
        %v918 = vld [vmem:[#allocation2 + $0x54] sm:$0xf]
        %v919 = vld [vmem:[#allocation2 + $0x58] sm:$0xf]
        %v920 = vld [vmem:[#allocation2 + $0x5c] sm:$0xf]
        %v945 = vunpack.c.l.b16 %v897
        %v946 = vunpack.c.l.b16 %v898
        %v947 = vunpack.c.l.b16 %v899
        %v948 = vunpack.c.l.b16 %v900
        %v949 = vunpack.c.l.b16 %v901
        %v950 = vunpack.c.l.b16 %v902
        %v951 = vunpack.c.l.b16 %v903
        %v952 = vunpack.c.l.b16 %v904
        %v953 = vunpack.c.l.b16 %v905
        %v954 = vunpack.c.l.b16 %v906
        %v955 = vunpack.c.l.b16 %v907
        %v956 = vunpack.c.l.b16 %v908
        %v957 = vunpack.c.l.b16 %v909
        %v958 = vunpack.c.l.b16 %v910
        %v959 = vunpack.c.l.b16 %v911
        %v960 = vunpack.c.l.b16 %v912
        %v961 = vunpack.c.l.b16 %v913
        %v962 = vunpack.c.l.b16 %v914
        %v963 = vunpack.c.l.b16 %v915
        %v964 = vunpack.c.l.b16 %v916
        %v965 = vunpack.c.l.b16 %v917
        %v966 = vunpack.c.l.b16 %v918
        %v967 = vunpack.c.l.b16 %v919
        %v968 = vunpack.c.l.b16 %v920
        %v969 = vpack.c.b16 %v946, %v945
        %v970 = vpack.c.b16 %v948, %v947
        %v971 = vpack.c.b16 %v950, %v949
        %v972 = vpack.c.b16 %v952, %v951
        %v973 = vpack.c.b16 %v954, %v953
        %v974 = vpack.c.b16 %v956, %v955
        %v975 = vpack.c.b16 %v958, %v957
        %v976 = vpack.c.b16 %v960, %v959
        %v977 = vpack.c.b16 %v962, %v961
        %v978 = vpack.c.b16 %v964, %v963
        %v979 = vpack.c.b16 %v966, %v965
        %v980 = vpack.c.b16 %v968, %v967
        %vm981 = vcmask 916480
        %v983 = vsel %vm981, %v969, 0
        %v986 = vsel %vm981, %v970, 0
        %v989 = vsel %vm981, %v971, 0
        %v992 = vsel %vm981, %v972, 0
        %v995 = vsel %vm981, %v973, 0
        %v998 = vsel %vm981, %v974, 0
        %v1001 = vsel %vm981, %v975, 0
        %v1004 = vsel %vm981, %v976, 0
        %v1007 = vsel %vm981, %v977, 0
        %v1010 = vsel %vm981, %v978, 0
        %v1013 = vsel %vm981, %v979, 0
        %v1016 = vsel %vm981, %v980, 0
        %1018 = vmatprep.subr.bf16.mxu0 0
        %1019 = vmatpush1.bf16.msra.mxu0 %v866
        %1020 = vmatprep.subr.bf16.mxu0 0
        %1021 = vmatpush1.bf16.msra.mxu0 %v867
        %1022 = vmatprep.subr.bf16.mxu0 0
        %1023 = vmatpush1.bf16.msra.mxu0 %v868
        %1024 = vmatprep.subr.bf16.mxu0 0
        %1025 = vmatpush1.bf16.msra.mxu0 %v869
        %1026 = vmatprep.subr.bf16.mxu0 0
        %1027 = vmatpush1.bf16.msra.mxu0 %v870
        %1028 = vmatprep.subr.bf16.mxu0 0
        %1029 = vmatpush1.bf16.msra.mxu0 %v871
        %1030 = vmatprep.subr.bf16.mxu0 0
        %1031 = vmatpush1.bf16.msra.mxu0 %v872
        %1032 = vmatprep.subr.bf16.mxu0 0
        %1033 = vmatpush1.bf16.msra.mxu0 0
        %1034 = vmatprep.subr.bf16.mxu0 0
        %1035 = vmatpush1.bf16.msra.mxu0 0
        %1036 = vmatprep.subr.bf16.mxu0 0
        %1037 = vmatpush1.bf16.msra.mxu0 0
        %1038 = vmatprep.subr.bf16.mxu0 0
        %1039 = vmatpush1.bf16.msra.mxu0 0
        %1040 = vmatprep.subr.bf16.mxu0 0
        %1041 = vmatpush1.bf16.msra.mxu0 0
        %1042 = vmatprep.subr.bf16.mxu0 0
        %1043 = vmatpush1.bf16.msra.mxu0 0
        %1044 = vmatprep.subr.bf16.mxu0 0
        %1045 = vmatpush1.bf16.msra.mxu0 0
        %1046 = vmatprep.subr.bf16.mxu0 0
        %1047 = vmatpush1.bf16.msra.mxu0 0
        %1048 = vmatprep.subr.bf16.mxu0 0
        %1049 = vmatpush1.bf16.msra.mxu0 0
        %1050 = vmatprep.mubr.bf16.mxu0 0
        %1051 = vmatmul.mubr.bf16.gmra.mrb[0].mxu0 %v983
        %v1052 = vpop.f32.mrb[0].mxu0
        %v1053 = vadd.f32 0.0, %v1052
        %v1054 = vpop.f32.mrb[0].mxu0
        %v1055 = vpop.f32.mrb[0].mxu0
        %v1056 = vadd.f32 0.0, %v1055
        %v1057 = vpop.f32.mrb[0].mxu0
        %1058 = vmatprep.mubr.bf16.mxu0 0
        %1059 = vmatmul.mubr.bf16.gmra.mrb[0].mxu0 %v986
        %v1060 = vpop.f32.mrb[0].mxu0
        %v1061 = vadd.f32 0.0, %v1060
        %v1062 = vpop.f32.mrb[0].mxu0
        %v1063 = vpop.f32.mrb[0].mxu0
        %v1064 = vadd.f32 0.0, %v1063
        %v1065 = vpop.f32.mrb[0].mxu0
        %1066 = vmatprep.mubr.bf16.mxu0 0
        %1067 = vmatmul.mubr.bf16.gmra.mrb[0].mxu0 %v989
        %v1068 = vpop.f32.mrb[0].mxu0
        %v1069 = vadd.f32 0.0, %v1068
        %v1070 = vpop.f32.mrb[0].mxu0
        %v1071 = vpop.f32.mrb[0].mxu0
        %v1072 = vadd.f32 0.0, %v1071
        %v1073 = vpop.f32.mrb[0].mxu0
        %1074 = vmatprep.mubr.bf16.mxu0 0
        %1075 = vmatmul.mubr.bf16.gmra.mrb[0].mxu0 %v992
        %v1076 = vpop.f32.mrb[0].mxu0
        %v1077 = vadd.f32 0.0, %v1076
        %v1078 = vpop.f32.mrb[0].mxu0
        %v1079 = vpop.f32.mrb[0].mxu0
        %v1080 = vadd.f32 0.0, %v1079
        %v1081 = vpop.f32.mrb[0].mxu0
        %1082 = vmatprep.mubr.bf16.mxu0 0
        %1083 = vmatmul.mubr.bf16.gmra.mrb[0].mxu0 %v995
        %v1084 = vpop.f32.mrb[0].mxu0
        %v1085 = vadd.f32 0.0, %v1084
        %v1086 = vpop.f32.mrb[0].mxu0
        %v1087 = vpop.f32.mrb[0].mxu0
        %v1088 = vadd.f32 0.0, %v1087
        %v1089 = vpop.f32.mrb[0].mxu0
        %1090 = vmatprep.mubr.bf16.mxu0 0
        %1091 = vmatmul.mubr.bf16.gmra.mrb[0].mxu0 %v998
        %v1092 = vpop.f32.mrb[0].mxu0
        %v1093 = vadd.f32 0.0, %v1092
        %v1094 = vpop.f32.mrb[0].mxu0
        %v1095 = vpop.f32.mrb[0].mxu0
        %v1096 = vadd.f32 0.0, %v1095
        %v1097 = vpop.f32.mrb[0].mxu0
        %1098 = vmatprep.mubr.bf16.mxu0 0
        %1099 = vmatmul.mubr.bf16.gmra.mrb[0].mxu0 %v1001
        %v1100 = vpop.f32.mrb[0].mxu0
        %v1101 = vadd.f32 0.0, %v1100
        %v1102 = vpop.f32.mrb[0].mxu0
        %v1103 = vpop.f32.mrb[0].mxu0
        %v1104 = vadd.f32 0.0, %v1103
        %v1105 = vpop.f32.mrb[0].mxu0
        %1106 = vmatprep.mubr.bf16.mxu0 0
        %1107 = vmatmul.mubr.bf16.gmra.mrb[0].mxu0 %v1004
        %v1108 = vpop.f32.mrb[0].mxu0
        %v1109 = vadd.f32 0.0, %v1108
        %v1110 = vpop.f32.mrb[0].mxu0
        %v1111 = vpop.f32.mrb[0].mxu0
        %v1112 = vadd.f32 0.0, %v1111
        %v1113 = vpop.f32.mrb[0].mxu0
        %1114 = vmatprep.mubr.bf16.mxu0 0
        %1115 = vmatmul.mubr.bf16.gmra.mrb[0].mxu0 %v1007
        %v1116 = vpop.f32.mrb[0].mxu0
        %v1117 = vadd.f32 0.0, %v1116
        %v1118 = vpop.f32.mrb[0].mxu0
        %v1119 = vpop.f32.mrb[0].mxu0
        %v1120 = vadd.f32 0.0, %v1119
        %v1121 = vpop.f32.mrb[0].mxu0
        %1122 = vmatprep.mubr.bf16.mxu0 0
        %1123 = vmatmul.mubr.bf16.gmra.mrb[0].mxu0 %v1010
        %v1124 = vpop.f32.mrb[0].mxu0
        %v1125 = vadd.f32 0.0, %v1124
        %v1126 = vpop.f32.mrb[0].mxu0
        %v1127 = vpop.f32.mrb[0].mxu0
        %v1128 = vadd.f32 0.0, %v1127
        %v1129 = vpop.f32.mrb[0].mxu0
        %1130 = vmatprep.mubr.bf16.mxu0 0
        %1131 = vmatmul.mubr.bf16.gmra.mrb[0].mxu0 %v1013
        %v1132 = vpop.f32.mrb[0].mxu0
        %v1133 = vadd.f32 0.0, %v1132
        %v1134 = vpop.f32.mrb[0].mxu0
        %v1135 = vpop.f32.mrb[0].mxu0
        %v1136 = vadd.f32 0.0, %v1135
        %v1137 = vpop.f32.mrb[0].mxu0
        %1138 = vmatprep.mubr.bf16.mxu0 0
        %1139 = vmatmul.mubr.bf16.gmra.mrb[0].mxu0 %v1016
        %v1140 = vpop.f32.mrb[0].mxu0
        %v1141 = vadd.f32 0.0, %v1140
        %v1142 = vpop.f32.mrb[0].mxu0
        %v1143 = vpop.f32.mrb[0].mxu0
        %v1144 = vadd.f32 0.0, %v1143
        %v1145 = vpop.f32.mrb[0].mxu0
        %1146 = vdwg.mxu0
        %v1171 = vunpack.c.l.b16 %v873
        %v1172 = vunpack.c.l.b16 %v874
        %v1173 = vunpack.c.l.b16 %v875
        %v1174 = vunpack.c.l.b16 %v876
        %v1175 = vunpack.c.l.b16 %v877
        %v1176 = vunpack.c.l.b16 %v878
        %v1177 = vunpack.c.l.b16 %v879
        %v1178 = vunpack.c.l.b16 %v880
        %v1179 = vunpack.c.l.b16 %v881
        %v1180 = vunpack.c.l.b16 %v882
        %v1181 = vunpack.c.l.b16 %v883
        %v1182 = vunpack.c.l.b16 %v884
        %v1183 = vunpack.c.l.b16 %v885
        %v1184 = vunpack.c.l.b16 %v886
        %v1185 = vunpack.c.l.b16 %v887
        %v1186 = vunpack.c.l.b16 %v888
        %v1187 = vunpack.c.l.b16 %v889
        %v1188 = vunpack.c.l.b16 %v890
        %v1189 = vunpack.c.l.b16 %v891
        %v1190 = vunpack.c.l.b16 %v892
        %v1191 = vunpack.c.l.b16 %v893
        %v1192 = vunpack.c.l.b16 %v894
        %v1193 = vunpack.c.l.b16 %v895
        %v1194 = vunpack.c.l.b16 %v896
        %v1195 = vpack.c.b16 %v1172, %v1171
        %v1196 = vpack.c.b16 %v1174, %v1173
        %v1197 = vpack.c.b16 %v1176, %v1175
        %v1198 = vpack.c.b16 %v1178, %v1177
        %v1199 = vpack.c.b16 %v1180, %v1179
        %v1200 = vpack.c.b16 %v1182, %v1181
        %v1201 = vpack.c.b16 %v1184, %v1183
        %v1202 = vpack.c.b16 %v1186, %v1185
        %v1203 = vpack.c.b16 %v1188, %v1187
        %v1204 = vpack.c.b16 %v1190, %v1189
        %v1205 = vpack.c.b16 %v1192, %v1191
        %v1206 = vpack.c.b16 %v1194, %v1193
        %v1208 = vsel %vm981, %v1195, 0
        %v1211 = vsel %vm981, %v1196, 0
        %v1214 = vsel %vm981, %v1197, 0
        %v1217 = vsel %vm981, %v1198, 0
        %v1220 = vsel %vm981, %v1199, 0
        %v1223 = vsel %vm981, %v1200, 0
        %v1226 = vsel %vm981, %v1201, 0
        %v1229 = vsel %vm981, %v1202, 0
        %v1232 = vsel %vm981, %v1203, 0
        %v1235 = vsel %vm981, %v1204, 0
        %v1238 = vsel %vm981, %v1205, 0
        %v1241 = vsel %vm981, %v1206, 0
        %1243 = vmatprep.subr.bf16.mxu0 0
        %1244 = vmatpush1.bf16.msra.mxu0 %v817
        %1245 = vmatprep.subr.bf16.mxu0 0
        %1246 = vmatpush1.bf16.msra.mxu0 %v818
        %1247 = vmatprep.subr.bf16.mxu0 0
        %1248 = vmatpush1.bf16.msra.mxu0 %v819
        %1249 = vmatprep.subr.bf16.mxu0 0
        %1250 = vmatpush1.bf16.msra.mxu0 %v820
        %1251 = vmatprep.subr.bf16.mxu0 0
        %1252 = vmatpush1.bf16.msra.mxu0 %v821
        %1253 = vmatprep.subr.bf16.mxu0 0
        %1254 = vmatpush1.bf16.msra.mxu0 %v822
        %1255 = vmatprep.subr.bf16.mxu0 0
        %1256 = vmatpush1.bf16.msra.mxu0 %v823
        %1257 = vmatprep.subr.bf16.mxu0 0
        %1258 = vmatpush1.bf16.msra.mxu0 0
        %1259 = vmatprep.subr.bf16.mxu0 0
        %1260 = vmatpush1.bf16.msra.mxu0 0
        %1261 = vmatprep.subr.bf16.mxu0 0
        %1262 = vmatpush1.bf16.msra.mxu0 0
        %1263 = vmatprep.subr.bf16.mxu0 0
        %1264 = vmatpush1.bf16.msra.mxu0 0
        %1265 = vmatprep.subr.bf16.mxu0 0
        %1266 = vmatpush1.bf16.msra.mxu0 0
        %1267 = vmatprep.subr.bf16.mxu0 0
        %1268 = vmatpush1.bf16.msra.mxu0 0
        %1269 = vmatprep.subr.bf16.mxu0 0
        %1270 = vmatpush1.bf16.msra.mxu0 0
        %1271 = vmatprep.subr.bf16.mxu0 0
        %1272 = vmatpush1.bf16.msra.mxu0 0
        %1273 = vmatprep.subr.bf16.mxu0 0
        %1274 = vmatpush1.bf16.msra.mxu0 0
        %1275 = vmatprep.mubr.bf16.mxu0 0
        %1276 = vmatmul.mubr.bf16.gmra.mrb[0].mxu0 %v1208
        %v1277 = vpop.f32.mrb[0].mxu0
        %v1278 = vadd.f32 %v1053, %v1277
        %v1279 = vpop.f32.mrb[0].mxu0
        %v1280 = vpop.f32.mrb[0].mxu0
        %v1281 = vadd.f32 %v1056, %v1280
        %v1282 = vpop.f32.mrb[0].mxu0
        %1283 = vmatprep.mubr.bf16.mxu0 0
        %1284 = vmatmul.mubr.bf16.gmra.mrb[0].mxu0 %v1211
        %v1285 = vpop.f32.mrb[0].mxu0
        %v1286 = vadd.f32 %v1061, %v1285
        %v1287 = vpop.f32.mrb[0].mxu0
        %v1288 = vpop.f32.mrb[0].mxu0
        %v1289 = vadd.f32 %v1064, %v1288
        %v1290 = vpop.f32.mrb[0].mxu0
        %1291 = vmatprep.mubr.bf16.mxu0 0
        %1292 = vmatmul.mubr.bf16.gmra.mrb[0].mxu0 %v1214
        %v1293 = vpop.f32.mrb[0].mxu0
        %v1294 = vadd.f32 %v1069, %v1293
        %v1295 = vpop.f32.mrb[0].mxu0
        %v1296 = vpop.f32.mrb[0].mxu0
        %v1297 = vadd.f32 %v1072, %v1296
        %v1298 = vpop.f32.mrb[0].mxu0
        %1299 = vmatprep.mubr.bf16.mxu0 0
        %1300 = vmatmul.mubr.bf16.gmra.mrb[0].mxu0 %v1217
        %v1301 = vpop.f32.mrb[0].mxu0
        %v1302 = vadd.f32 %v1077, %v1301
        %v1303 = vpop.f32.mrb[0].mxu0
        %v1304 = vpop.f32.mrb[0].mxu0
        %v1305 = vadd.f32 %v1080, %v1304
        %v1306 = vpop.f32.mrb[0].mxu0
        %1307 = vmatprep.mubr.bf16.mxu0 0
        %1308 = vmatmul.mubr.bf16.gmra.mrb[0].mxu0 %v1220
        %v1309 = vpop.f32.mrb[0].mxu0
        %v1310 = vadd.f32 %v1085, %v1309
        %v1311 = vpop.f32.mrb[0].mxu0
        %v1312 = vpop.f32.mrb[0].mxu0
        %v1313 = vadd.f32 %v1088, %v1312
        %v1314 = vpop.f32.mrb[0].mxu0
        %1315 = vmatprep.mubr.bf16.mxu0 0
        %1316 = vmatmul.mubr.bf16.gmra.mrb[0].mxu0 %v1223
        %v1317 = vpop.f32.mrb[0].mxu0
        %v1318 = vadd.f32 %v1093, %v1317
        %v1319 = vpop.f32.mrb[0].mxu0
        %v1320 = vpop.f32.mrb[0].mxu0
        %v1321 = vadd.f32 %v1096, %v1320
        %v1322 = vpop.f32.mrb[0].mxu0
        %1323 = vmatprep.mubr.bf16.mxu0 0
        %1324 = vmatmul.mubr.bf16.gmra.mrb[0].mxu0 %v1226
        %v1325 = vpop.f32.mrb[0].mxu0
        %v1326 = vadd.f32 %v1101, %v1325
        %v1327 = vpop.f32.mrb[0].mxu0
        %v1328 = vpop.f32.mrb[0].mxu0
        %v1329 = vadd.f32 %v1104, %v1328
        %v1330 = vpop.f32.mrb[0].mxu0
        %1331 = vmatprep.mubr.bf16.mxu0 0
        %1332 = vmatmul.mubr.bf16.gmra.mrb[0].mxu0 %v1229
        %v1333 = vpop.f32.mrb[0].mxu0
        %v1334 = vadd.f32 %v1109, %v1333
        %v1335 = vpop.f32.mrb[0].mxu0
        %v1336 = vpop.f32.mrb[0].mxu0
        %v1337 = vadd.f32 %v1112, %v1336
        %v1338 = vpop.f32.mrb[0].mxu0
        %1339 = vmatprep.mubr.bf16.mxu0 0
        %1340 = vmatmul.mubr.bf16.gmra.mrb[0].mxu0 %v1232
        %v1341 = vpop.f32.mrb[0].mxu0
        %v1342 = vadd.f32 %v1117, %v1341
        %v1343 = vpop.f32.mrb[0].mxu0
        %v1344 = vpop.f32.mrb[0].mxu0
        %v1345 = vadd.f32 %v1120, %v1344
        %v1346 = vpop.f32.mrb[0].mxu0
        %1347 = vmatprep.mubr.bf16.mxu0 0
        %1348 = vmatmul.mubr.bf16.gmra.mrb[0].mxu0 %v1235
        %v1349 = vpop.f32.mrb[0].mxu0
        %v1350 = vadd.f32 %v1125, %v1349
        %v1351 = vpop.f32.mrb[0].mxu0
        %v1352 = vpop.f32.mrb[0].mxu0
        %v1353 = vadd.f32 %v1128, %v1352
        %v1354 = vpop.f32.mrb[0].mxu0
        %1355 = vmatprep.mubr.bf16.mxu0 0
        %1356 = vmatmul.mubr.bf16.gmra.mrb[0].mxu0 %v1238
        %v1357 = vpop.f32.mrb[0].mxu0
        %v1358 = vadd.f32 %v1133, %v1357
        %v1359 = vpop.f32.mrb[0].mxu0
        %v1360 = vpop.f32.mrb[0].mxu0
        %v1361 = vadd.f32 %v1136, %v1360
        %v1362 = vpop.f32.mrb[0].mxu0
        %1363 = vmatprep.mubr.bf16.mxu0 0
        %1364 = vmatmul.mubr.bf16.gmra.mrb[0].mxu0 %v1241
        %v1365 = vpop.f32.mrb[0].mxu0
        %v1366 = vadd.f32 %v1141, %v1365
        %v1367 = vpop.f32.mrb[0].mxu0
        %v1368 = vpop.f32.mrb[0].mxu0
        %v1369 = vadd.f32 %v1144, %v1368
        %v1370 = vpop.f32.mrb[0].mxu0
        %1371 = vdwg.mxu0
        %1372 = vst [vmem:[%s267] sm:$0xff] %v1278
        %1373 = vst [vmem:[%s267 + $0x8] sm:$0xff] %v1281
        %1374 = vst [vmem:[%s267 + $0x10] sm:$0xff] %v1286
        %1375 = vst [vmem:[%s267 + $0x18] sm:$0xff] %v1289
        %1376 = vst [vmem:[%s267 + $0x20] sm:$0xff] %v1294
        %1377 = vst [vmem:[%s267 + $0x28] sm:$0xff] %v1297
        %1378 = vst [vmem:[%s267 + $0x30] sm:$0xff] %v1302
        %1379 = vst [vmem:[%s267 + $0x38] sm:$0xff] %v1305
        %1380 = vst [vmem:[%s267 + $0x40] sm:$0xff] %v1310
        %1381 = vst [vmem:[%s267 + $0x48] sm:$0xff] %v1313
        %1382 = vst [vmem:[%s267 + $0x50] sm:$0xff] %v1318
        %1383 = vst [vmem:[%s267 + $0x58] sm:$0xff] %v1321
        %1384 = vst [vmem:[%s267 + $0x60] sm:$0xff] %v1326
        %1385 = vst [vmem:[%s267 + $0x68] sm:$0xff] %v1329
        %1386 = vst [vmem:[%s267 + $0x70] sm:$0xff] %v1334
        %1387 = vst [vmem:[%s267 + $0x78] sm:$0xff] %v1337
        %1388 = vst [vmem:[%s267 + $0x80] sm:$0xff] %v1342
        %1389 = vst [vmem:[%s267 + $0x88] sm:$0xff] %v1345
        %1390 = vst [vmem:[%s267 + $0x90] sm:$0xff] %v1350
        %1391 = vst [vmem:[%s267 + $0x98] sm:$0xff] %v1353
        %1392 = vst [vmem:[%s267 + $0xa0] sm:$0xff] %v1358
        %1393 = vst [vmem:[%s267 + $0xa8] sm:$0xff] %v1361
        %1394 = vst [vmem:[%s267 + $0xb0] sm:$0xff] %v1366
        %1395 = vst [vmem:[%s267 + $0xb8] sm:$0xff] %v1369
        %s1396 = sand.u32 %s159, 1
        %s1397 = scalar_lea.sflag [#allocation4], %s1396
        %s1398 = sand.u32 %s159, 1
        %s1399 = smul.addr %s1398, 192
        %s1400 = scalar_lea.vmem [#allocation5], %s1399
        // Predicated region
        $region45: #{tpu_custom_call.1} parent=39 // pred_check
          %p1401 = pneg %p169
        $region46: #{tpu_custom_call.1} parent=39 // pred_check_branch
          %1403 = sbr.rel (%p1401) target = $region48
        $region47: #{tpu_custom_call.1} parent=39 // pred_region
          %s1405 = ssub.s32 3072, 3072
          %1406 = vsyncadd %s1397, %s1405
          %s1407 = smul.addr %s25, 24
          %s1408 = sadd.s32 %s24, %s1407
          %s1409 = smul.addr %s1408, 128
          %s1410 = scalar_lea.hbm %s5, %s1409
          %s1411 = sshll.u32 %s1400, 4
          %s1412 = int_to_ptr.vmem [resolvable:$true] %s1411
          %1417 = dma.vmem_to_hbm [thread:$0]  %s1412, 3072, %s1410, %s1397, 128, 128, 8
        $region48: #{tpu_custom_call.1} parent=39 // pred_fallthru
          _
      $region40: #{tpu_custom_call.1} parent=5 // pred_fallthru
        _
      %p1418 = scmp.le.s32.totalorder 2, %s15
      // Predicated region
      $region49: #{tpu_custom_call.1} parent=5 // pred_check
        %p1419 = pneg %p1418
      $region50: #{tpu_custom_call.1} parent=5 // pred_check_branch
        %1421 = sbr.rel (%p1419) target = $region52
      $region51: #{tpu_custom_call.1} parent=5 // pred_region
        %s1422 = ssub.s32 %s15, 2
        // Predicated region
        $region53: #{tpu_custom_call.1} parent=51 // pred_check
          %p1423 = pneg %p175
        $region54: #{tpu_custom_call.1} parent=51 // pred_check_branch
          %1425 = sbr.rel (%p1423) target = $region56
        $region55: #{tpu_custom_call.1} parent=51 // pred_region
          %s1426 = sand.u32 %s160, 1
          %s1427 = scalar_lea.sflag [#allocation4], %s1426
          %s1428 = sand.u32 %s160, 1
          %s1429 = smul.addr %s1428, 192
          %s1430 = scalar_lea.vmem [#allocation5], %s1429
          %1431 = dma.done %s1427, 3072
        $region56: #{tpu_custom_call.1} parent=51 // pred_fallthru
          _
      $region52: #{tpu_custom_call.1} parent=5 // pred_fallthru
        _
    $region6: #{tpu_custom_call.1} parent=1 // loop_footer
      %s19 = sadd.s32 1, %s15
    $region7: #{tpu_custom_call.1} parent=1 // loop_footer_branch
      %14 = sbr.rel target = $region3
    $region8: #{tpu_custom_call.1} parent=1 // loop_exit
      _
    %1432 = vsyncpa [#allocation3], 1
    %s1433 = scalar_lea.sflag [#allocation3], 1
    %1434 = vsyncpa %s1433, 1
    %1435 = vsyncpa [#allocation4], 1
    %s1436 = scalar_lea.sflag [#allocation4], 1
    %1437 = vsyncpa %s1436, 1

</llo_original>
